<compile_context>
chip_gen: v6e
topology: v6e:2x2x1
jax: 0.10.0
libtpu: 0.0.40
codegen_flags: <defaults>
</compile_context>

<pallas_src>
import math
from functools import partial

import jax
import jax.numpy as jnp
from jax import lax
from jax.experimental import pallas as pl
from jax.experimental.pallas import tpu as pltpu

ALPHA = 1.0
GAMMA = 2.0
SIZE_AVERAGE = True

LANES = 128
MAX_TILE_ROWS = 8192     # 8192 x 128 f32 block = 4 MiB per stream per buffer
CHUNK_ROWS = 64          # inner-loop chunk: 8 f32 vregs per temp (fits regfile)


def _cdiv(a, b):
    return -(-a // b)


def _round_up(a, b):
    return _cdiv(a, b) * b


def _row_align(dtype):
    # sublane packing per dtype width: f32 -> 8, bf16 -> 16, int8/bool -> 32
    return {4: 8, 2: 16, 1: 32}.get(jnp.dtype(dtype).itemsize, 8)


def _tensorcores_per_chip():
    # Only v7x exposes 2 TensorCores per chip worth splitting for; v5e/v6e are
    # single-TC, so a split there only wastes a padded tile.
    try:
        kind = jax.devices()[0].device_kind.lower()
    except Exception:
        return 1
    if "v7" in kind or "7x" in kind:
        return 2
    return 1


def _focal_kernel(x_ref, t_ref, o_ref, *, alpha, gamma, full_rows, rem_lanes,
                  tile_rows, chunk_rows, blocks_per_split, binary_targets):
    c = pl.program_id(0)                  # core-split axis
    i = pl.program_id(1)                  # streaming / reduction axis
    blk = c * blocks_per_split + i        # logical block id (may exceed real blocks)
    blk_row0 = blk * tile_rows            # first global row of this logical block

    @pl.when(i == 0)
    def _init():
        o_ref[...] = jnp.zeros_like(o_ref)

    num_chunks = tile_rows // chunk_rows
    g = float(gamma)
    a = float(alpha)

    def chunk_loss(off):
        xs = x_ref[pl.ds(off, chunk_rows), :].astype(jnp.float32)
        ts = t_ref[pl.ds(off, chunk_rows), :].astype(jnp.float32)
        s = jnp.exp(-jnp.abs(xs))
        # Numerically-stable BCE-with-logits (matches torch):
        #   ce = max(x, 0) - x*t + log1p(exp(-|x|))
        ce = jnp.maximum(xs, 0.0) - xs * ts + jnp.log1p(s)
        if binary_targets:
            # For t in {0,1}: pt == sigmoid(x) if t==1 else 1-sigmoid(x).
            # Reuses s -> only 2 heavy EUP transcendentals (exp, log1p) per
            # element instead of exp/log1p/exp.  Exact division keeps the
            # result bit-close to the reference (approx reciprocal optional).
            r = 1.0 / (1.0 + s)                          # sigmoid(|x|)
            sig = jnp.where(xs >= 0.0, r, 1.0 - r)       # sigmoid(x)
            pt = jnp.where(ts > 0.5, sig, 1.0 - sig)
        else:
            pt = jnp.exp(-ce)                            # general soft-target path
        q = 1.0 - pt
        if g == 2.0:
            mod = q * q                                  # no float pow
        elif g.is_integer() and g >= 0.0:
            mod = jnp.ones_like(q)
            for _ in range(int(g)):
                mod = mod * q
        else:
            mod = jnp.maximum(q, 0.0) ** g               # clamp avoids log(<0) NaN
        return (a * mod) * ce                            # (chunk_rows, LANES) f32

    def fold(v):
        # Per-lane / per-sublane partial sums: pure VPU adds; the tiny
        # cross-lane reduce is deferred to the wrapper.
        return v.reshape(-1, 8, LANES).sum(axis=0)       # (8, LANES)

    zero = jnp.zeros((8, LANES), jnp.float32)
    needs_mask = blk_row0 + tile_rows > full_rows        # boundary or excess block

    @pl.when(jnp.logical_not(needs_mask))
    def _fast():
        def body(k, acc):
            off = pl.multiple_of(k * chunk_rows, chunk_rows)
            return acc + fold(chunk_loss(off))
        o_ref[0] += lax.fori_loop(0, num_chunks, body, zero)

    @pl.when(needs_mask)
    def _masked():
        # Row-relative mask (no global element index -> no int32 overflow).
        row_iota = lax.broadcasted_iota(jnp.int32, (chunk_rows, LANES), 0)
        lane_iota = lax.broadcasted_iota(jnp.int32, (chunk_rows, LANES), 1)

        def body(k, acc):
            off = pl.multiple_of(k * chunk_rows, chunk_rows)
            fl = chunk_loss(off)
            grow = blk_row0 + off + row_iota             # global row index
            valid = grow < full_rows
            if rem_lanes:
                valid = valid | ((grow == full_rows) & (lane_iota < rem_lanes))
            return acc + fold(jnp.where(valid, fl, 0.0))
        o_ref[0] += lax.fori_loop(0, num_chunks, body, zero)


def focal_loss(inputs, targets, *, alpha=ALPHA, gamma=GAMMA,
               size_average=SIZE_AVERAGE, binary_targets=True):
    """Focal loss matching FocalLoss.forward.

    binary_targets=True (default) assumes targets are {0,1} labels (exact and
    cheaper); set False for soft targets to use the literal exp(-ce) formula.
    """
    assert inputs.shape == targets.shape
    n_elems = int(math.prod(inputs.shape))

    x = inputs.reshape(-1)                   # stream native dtypes (kernel upcasts)
    t = targets.reshape(-1)

    align = max(_row_align(x.dtype), _row_align(t.dtype))
    rows = _cdiv(n_elems, LANES)
    rows_arr = _round_up(rows, align)        # minimal alignment pad (usually 0)

    pad = rows_arr * LANES - n_elems
    if pad:                                  # rare; tiny tail only, no block rounding
        x = jnp.pad(x, (0, pad))
        t = jnp.pad(t, (0, pad))
    x2 = x.reshape(rows_arr, LANES)
    t2 = t.reshape(rows_arr, LANES)

    # Block / chunk sizing.
    if rows_arr <= CHUNK_ROWS:
        tile_rows = rows_arr
        chunk_rows = rows_arr
    else:
        chunk_rows = CHUNK_ROWS
        tile_rows = min(MAX_TILE_ROWS, (rows_arr // CHUNK_ROWS) * CHUNK_ROWS)

    blocks = _cdiv(rows_arr, tile_rows)      # real blocks (last one may be ragged)
    num_splits = _tensorcores_per_chip() if blocks >= 2 else 1
    num_splits = max(1, min(num_splits, blocks))
    blocks_per_split = _cdiv(blocks, num_splits)

    full_rows = n_elems // LANES             # completely-valid rows   (static)
    rem_lanes = n_elems % LANES              # valid lanes of last row (static)

    kernel = partial(
        _focal_kernel,
        alpha=float(alpha), gamma=float(gamma),
        full_rows=full_rows, rem_lanes=rem_lanes,
        tile_rows=tile_rows, chunk_rows=chunk_rows,
        blocks_per_split=blocks_per_split,
        binary_targets=bool(binary_targets))

    last_block = blocks - 1

    def in_map(c, i):
        # Clamp so split-cdiv excess blocks re-read an in-bounds block (their
        # contribution is fully masked in-kernel); no OOB HBM addressing.
        return (jnp.minimum(c * blocks_per_split + i, last_block), 0)

    def build(semantics):
        return pl.pallas_call(
            kernel,
            out_shape=jax.ShapeDtypeStruct((num_splits, 8, LANES), jnp.float32),
            grid_spec=pltpu.PrefetchScalarGridSpec(
                num_scalar_prefetch=0,
                grid=(num_splits, blocks_per_split),
                in_specs=[
                    pl.BlockSpec((tile_rows, LANES), in_map),
                    pl.BlockSpec((tile_rows, LANES), in_map),
                ],
                out_specs=pl.BlockSpec((1, 8, LANES), lambda c, i: (c, 0, 0)),
            ),
            compiler_params=pltpu.CompilerParams(
                dimension_semantics=semantics,
                # Worst case (f32 x f32 streams, 8192-row blocks):
                # 2 streams x 2 buffers x 4 MiB + ~2 MiB chunk temps << 32 MiB,
                # within every generation's VMEM (incl. v7x's 64 MiB physical).
                vmem_limit_bytes=32 * 1024 * 1024),
        )

    arb = getattr(pltpu, "ARBITRARY", "arbitrary")
    par = getattr(pltpu, "PARALLEL", "parallel")
    if num_splits > 1:
        semantics = (getattr(pltpu, "CORE_PARALLEL", par), arb)
    else:
        semantics = (arb, arb)

    try:
        partials = build(semantics)(x2, t2)
    except Exception:
        if num_splits > 1:
            # CORE_PARALLEL not accepted on this backend -> plain parallel axis.
            partials = build((par, arb))(x2, t2)
        else:
            raise

    total = jnp.sum(partials.astype(jnp.float32))      # tiny epilogue reduce
    if size_average:
        return total / jnp.float32(n_elems)
    return total


def _reference(inputs, targets, alpha=ALPHA, gamma=GAMMA,
               size_average=SIZE_AVERAGE):
    x = inputs.astype(jnp.float32)
    t = targets.astype(jnp.float32)
    ce = jnp.maximum(x, 0.0) - x * t + jnp.log1p(jnp.exp(-jnp.abs(x)))
    pt = jnp.exp(-ce)
    fl = alpha * (1.0 - pt) ** gamma * ce
    return fl.mean() if size_average else fl.sum()


if __name__ == "__main__":
    key = jax.random.PRNGKey(0)
    k1, k2 = jax.random.split(key)
    shape = (2, 4, 16, 16)   # small NCHW logits consistent with the module usage
    inputs = jax.random.normal(k1, shape, dtype=jnp.float32)
    # {0,1} targets streamed as bf16 (exact for binary labels, halves one stream's
    # HBM traffic on the memory-bound generations).
    targets = (jax.random.uniform(k2, shape) > 0.5).astype(jnp.bfloat16)

    # Default (mean, binary-target fast path).
    out = jax.block_until_ready(focal_loss(inputs, targets))
    ref = _reference(inputs, targets)
    assert jnp.allclose(out, ref, rtol=1e-4, atol=1e-6), (out, ref)

    # General soft-target path + sum reduction (literal exp(-ce) formula).
    out2 = jax.block_until_ready(
        focal_loss(inputs, targets.astype(jnp.float32),
                   size_average=False, binary_targets=False))
    ref2 = _reference(inputs, targets, size_average=False)
    assert jnp.allclose(out2, ref2, rtol=1e-4, atol=1e-4), (out2, ref2)

    print("KERNEL_OK")
</pallas_src>

<mosaic_0001>
module attributes {stable_mosaic.version = 11 : i64} {
  func.func @_focal_kernel(%arg0: i32, %arg1: i32, %arg2: memref<16x128xf32, #tpu.memory_space<vmem>>, %arg3: memref<16x128xbf16, #tpu.memory_space<vmem>>, %arg4: memref<1x8x128xf32, #tpu.memory_space<vmem>>) attributes {dimension_semantics = [#tpu.dimension_semantics<arbitrary>, #tpu.dimension_semantics<arbitrary>], iteration_bounds = array<i64: 1, 1>, scalar_prefetch = 0 : i64, scratch_operands = 0 : i64, tpu.core_type = #tpu.core_type<tc>, window_params = [{transform_indices = @transform_0, window_bounds = array<i64: 16, 128>}, {transform_indices = @transform_1, window_bounds = array<i64: 16, 128>}, {transform_indices = @transform_2, window_bounds = array<i64: 1, 8, 128>}]} {
    %c1_i32 = arith.constant 1 : i32
    %0 = arith.muli %arg0, %c1_i32 : i32
    %1 = arith.addi %0, %arg1 : i32
    %c16_i32 = arith.constant 16 : i32
    %2 = arith.muli %1, %c16_i32 : i32
    %c0_i32 = arith.constant 0 : i32
    %3 = arith.cmpi eq, %arg1, %c0_i32 : i32
    %4 = arith.extui %3 : i1 to i32
    %c0_i32_0 = arith.constant 0 : i32
    %5 = arith.cmpi ne, %4, %c0_i32_0 : i32
    scf.if %5 {
      %cst_5 = arith.constant 0.000000e+00 : f32
      %14 = vector.broadcast %cst_5 : f32 to vector<1x8x128xf32>
      %c0 = arith.constant 0 : index
      %c0_6 = arith.constant 0 : index
      %c0_7 = arith.constant 0 : index
      %15 = vector.load %arg4[%c0, %c0_6, %c0_7] : memref<1x8x128xf32, #tpu.memory_space<vmem>>, vector<1x8x128xf32>
      tpu.vector_store %arg4[%c0, %c0_6, %c0_7], %14 {strides = array<i32>} : memref<1x8x128xf32, #tpu.memory_space<vmem>>, vector<1x8x128xf32>,
    } else {
    }
    %cst = arith.constant 0.000000e+00 : f32
    %6 = vector.broadcast %cst : f32 to vector<8x128xf32>
    %c16_i32_1 = arith.constant 16 : i32
    %7 = arith.addi %2, %c16_i32_1 : i32
    %c16_i32_2 = arith.constant 16 : i32
    %8 = arith.cmpi sgt, %7, %c16_i32_2 : i32
    %true = arith.constant true
    %9 = arith.xori %8, %true : i1
    %10 = arith.extui %9 : i1 to i32
    %c0_i32_3 = arith.constant 0 : i32
    %11 = arith.cmpi ne, %10, %c0_i32_3 : i32
    scf.if %11 {
      %c0 = arith.constant 0 : index
      %c0_5 = arith.constant 0 : index
      %c0_6 = arith.constant 0 : index
      %14 = vector.load %arg4[%c0, %c0_5, %c0_6] : memref<1x8x128xf32, #tpu.memory_space<vmem>>, vector<1x8x128xf32>
      %15 = vector.shape_cast %14 : vector<1x8x128xf32> to vector<8x128xf32>
      %c0_i32_7 = arith.constant 0 : i32
      %c16_i32_8 = arith.constant 16 : i32
      %16 = arith.muli %c0_i32_7, %c16_i32_8 : i32
      %17 = tpu.assume_multiple %16, 16 : i32
      %18 = arith.index_cast %17 : i32 to index
      %c0_9 = arith.constant 0 : index
      %19 = vector.load %arg2[%18, %c0_9] : memref<16x128xf32, #tpu.memory_space<vmem>>, vector<16x128xf32>
      %20 = arith.index_cast %17 : i32 to index
      %c0_10 = arith.constant 0 : index
      %21 = vector.load %arg3[%20, %c0_10] : memref<16x128xbf16, #tpu.memory_space<vmem>>, vector<16x128xbf16>
      %22 = arith.extf %21 : vector<16x128xbf16> to vector<16x128xf32>
      %23 = math.absf %19 : vector<16x128xf32>
      %cst_11 = arith.constant 0.000000e+00 : f32
      %24 = vector.broadcast %cst_11 : f32 to vector<16x128xf32>
      %25 = arith.subf %24, %23 : vector<16x128xf32>
      %26 = math.exp %25 : vector<16x128xf32>
      %cst_12 = arith.constant 0.000000e+00 : f32
      %27 = vector.broadcast %cst_12 : f32 to vector<16x128xf32>
      %28 = arith.maximumf %19, %27 : vector<16x128xf32>
      %29 = arith.mulf %19, %22 : vector<16x128xf32>
      %30 = arith.subf %28, %29 : vector<16x128xf32>
      %31 = math.log1p %26 : vector<16x128xf32>
      %32 = arith.addf %30, %31 : vector<16x128xf32>
      %cst_13 = arith.constant 1.000000e+00 : f32
      %33 = vector.broadcast %cst_13 : f32 to vector<16x128xf32>
      %34 = arith.addf %33, %26 : vector<16x128xf32>
      %cst_14 = arith.constant 1.000000e+00 : f32
      %35 = vector.broadcast %cst_14 : f32 to vector<16x128xf32>
      %36 = arith.divf %35, %34 : vector<16x128xf32>
      %cst_15 = arith.constant 0.000000e+00 : f32
      %37 = vector.broadcast %cst_15 : f32 to vector<16x128xf32>
      %38 = arith.cmpf oge, %19, %37 : vector<16x128xf32>
      %cst_16 = arith.constant 1.000000e+00 : f32
      %39 = vector.broadcast %cst_16 : f32 to vector<16x128xf32>
      %40 = arith.subf %39, %36 : vector<16x128xf32>
      %41 = arith.select %38, %36, %40 : vector<16x128xi1>, vector<16x128xf32>
      %cst_17 = arith.constant 5.000000e-01 : f32
      %42 = vector.broadcast %cst_17 : f32 to vector<16x128xf32>
      %43 = arith.cmpf ogt, %22, %42 : vector<16x128xf32>
      %cst_18 = arith.constant 1.000000e+00 : f32
      %44 = vector.broadcast %cst_18 : f32 to vector<16x128xf32>
      %45 = arith.subf %44, %41 : vector<16x128xf32>
      %46 = arith.select %43, %41, %45 : vector<16x128xi1>, vector<16x128xf32>
      %cst_19 = arith.constant 1.000000e+00 : f32
      %47 = vector.broadcast %cst_19 : f32 to vector<16x128xf32>
      %48 = arith.subf %47, %46 : vector<16x128xf32>
      %49 = arith.mulf %48, %48 : vector<16x128xf32>
      %cst_20 = arith.constant 1.000000e+00 : f32
      %50 = vector.broadcast %cst_20 : f32 to vector<16x128xf32>
      %51 = arith.mulf %50, %49 : vector<16x128xf32>
      %52 = arith.mulf %51, %32 : vector<16x128xf32>
      %53 = vector.shape_cast %52 : vector<16x128xf32> to vector<2x8x128xf32>
      %cst_21 = arith.constant dense<0.000000e+00> : vector<8x128xf32>
      %54 = vector.multi_reduction <add>, %53, %cst_21 [0] : vector<2x8x128xf32> to vector<8x128xf32>
      %55 = arith.addf %6, %54 : vector<8x128xf32>
      %c1_i32_22 = arith.constant 1 : i32
      %56 = arith.addf %15, %55 : vector<8x128xf32>
      %c0_23 = arith.constant 0 : index
      %c0_24 = arith.constant 0 : index
      %c0_25 = arith.constant 0 : index
      %57 = vector.load %arg4[%c0_23, %c0_24, %c0_25] : memref<1x8x128xf32, #tpu.memory_space<vmem>>, vector<1x8x128xf32>
      %58 = vector.shape_cast %57 : vector<1x8x128xf32> to vector<8x128xf32>
      %59 = vector.shape_cast %56 : vector<8x128xf32> to vector<1x8x128xf32>
      tpu.vector_store %arg4[%c0_23, %c0_24, %c0_25], %59 {strides = array<i32>} : memref<1x8x128xf32, #tpu.memory_space<vmem>>, vector<1x8x128xf32>,
    } else {
    }
    %12 = arith.extui %8 : i1 to i32
    %c0_i32_4 = arith.constant 0 : i32
    %13 = arith.cmpi ne, %12, %c0_i32_4 : i32
    scf.if %13 {
      %14 = tpu.iota {dimensions = array<i32: 0>} : vector<16x128xi32>
      %c0 = arith.constant 0 : index
      %c0_5 = arith.constant 0 : index
      %c0_6 = arith.constant 0 : index
      %15 = vector.load %arg4[%c0, %c0_5, %c0_6] : memref<1x8x128xf32, #tpu.memory_space<vmem>>, vector<1x8x128xf32>
      %16 = vector.shape_cast %15 : vector<1x8x128xf32> to vector<8x128xf32>
      %c0_i32_7 = arith.constant 0 : i32
      %c16_i32_8 = arith.constant 16 : i32
      %17 = arith.muli %c0_i32_7, %c16_i32_8 : i32
      %18 = tpu.assume_multiple %17, 16 : i32
      %19 = arith.index_cast %18 : i32 to index
      %c0_9 = arith.constant 0 : index
      %20 = vector.load %arg2[%19, %c0_9] : memref<16x128xf32, #tpu.memory_space<vmem>>, vector<16x128xf32>
      %21 = arith.index_cast %18 : i32 to index
      %c0_10 = arith.constant 0 : index
      %22 = vector.load %arg3[%21, %c0_10] : memref<16x128xbf16, #tpu.memory_space<vmem>>, vector<16x128xbf16>
      %23 = arith.extf %22 : vector<16x128xbf16> to vector<16x128xf32>
      %24 = math.absf %20 : vector<16x128xf32>
      %cst_11 = arith.constant 0.000000e+00 : f32
      %25 = vector.broadcast %cst_11 : f32 to vector<16x128xf32>
      %26 = arith.subf %25, %24 : vector<16x128xf32>
      %27 = math.exp %26 : vector<16x128xf32>
      %cst_12 = arith.constant 0.000000e+00 : f32
      %28 = vector.broadcast %cst_12 : f32 to vector<16x128xf32>
      %29 = arith.maximumf %20, %28 : vector<16x128xf32>
      %30 = arith.mulf %20, %23 : vector<16x128xf32>
      %31 = arith.subf %29, %30 : vector<16x128xf32>
      %32 = math.log1p %27 : vector<16x128xf32>
      %33 = arith.addf %31, %32 : vector<16x128xf32>
      %cst_13 = arith.constant 1.000000e+00 : f32
      %34 = vector.broadcast %cst_13 : f32 to vector<16x128xf32>
      %35 = arith.addf %34, %27 : vector<16x128xf32>
      %cst_14 = arith.constant 1.000000e+00 : f32
      %36 = vector.broadcast %cst_14 : f32 to vector<16x128xf32>
      %37 = arith.divf %36, %35 : vector<16x128xf32>
      %cst_15 = arith.constant 0.000000e+00 : f32
      %38 = vector.broadcast %cst_15 : f32 to vector<16x128xf32>
      %39 = arith.cmpf oge, %20, %38 : vector<16x128xf32>
      %cst_16 = arith.constant 1.000000e+00 : f32
      %40 = vector.broadcast %cst_16 : f32 to vector<16x128xf32>
      %41 = arith.subf %40, %37 : vector<16x128xf32>
      %42 = arith.select %39, %37, %41 : vector<16x128xi1>, vector<16x128xf32>
      %cst_17 = arith.constant 5.000000e-01 : f32
      %43 = vector.broadcast %cst_17 : f32 to vector<16x128xf32>
      %44 = arith.cmpf ogt, %23, %43 : vector<16x128xf32>
      %cst_18 = arith.constant 1.000000e+00 : f32
      %45 = vector.broadcast %cst_18 : f32 to vector<16x128xf32>
      %46 = arith.subf %45, %42 : vector<16x128xf32>
      %47 = arith.select %44, %42, %46 : vector<16x128xi1>, vector<16x128xf32>
      %cst_19 = arith.constant 1.000000e+00 : f32
      %48 = vector.broadcast %cst_19 : f32 to vector<16x128xf32>
      %49 = arith.subf %48, %47 : vector<16x128xf32>
      %50 = arith.mulf %49, %49 : vector<16x128xf32>
      %cst_20 = arith.constant 1.000000e+00 : f32
      %51 = vector.broadcast %cst_20 : f32 to vector<16x128xf32>
      %52 = arith.mulf %51, %50 : vector<16x128xf32>
      %53 = arith.mulf %52, %33 : vector<16x128xf32>
      %54 = arith.addi %2, %18 : i32
      %55 = vector.broadcast %54 : i32 to vector<16x128xi32>
      %56 = arith.addi %55, %14 : vector<16x128xi32>
      %c16_i32_21 = arith.constant 16 : i32
      %57 = vector.broadcast %c16_i32_21 : i32 to vector<16x128xi32>
      %58 = arith.cmpi slt, %56, %57 : vector<16x128xi32>
      %cst_22 = arith.constant 0.000000e+00 : f32
      %59 = vector.broadcast %cst_22 : f32 to vector<16x128xf32>
      %60 = arith.select %58, %53, %59 : vector<16x128xi1>, vector<16x128xf32>
      %61 = vector.shape_cast %60 : vector<16x128xf32> to vector<2x8x128xf32>
      %cst_23 = arith.constant dense<0.000000e+00> : vector<8x128xf32>
      %62 = vector.multi_reduction <add>, %61, %cst_23 [0] : vector<2x8x128xf32> to vector<8x128xf32>
      %63 = arith.addf %6, %62 : vector<8x128xf32>
      %c1_i32_24 = arith.constant 1 : i32
      %64 = arith.addf %16, %63 : vector<8x128xf32>
      %c0_25 = arith.constant 0 : index
      %c0_26 = arith.constant 0 : index
      %c0_27 = arith.constant 0 : index
      %65 = vector.load %arg4[%c0_25, %c0_26, %c0_27] : memref<1x8x128xf32, #tpu.memory_space<vmem>>, vector<1x8x128xf32>
      %66 = vector.shape_cast %65 : vector<1x8x128xf32> to vector<8x128xf32>
      %67 = vector.shape_cast %64 : vector<8x128xf32> to vector<1x8x128xf32>
      tpu.vector_store %arg4[%c0_25, %c0_26, %c0_27], %67 {strides = array<i32>} : memref<1x8x128xf32, #tpu.memory_space<vmem>>, vector<1x8x128xf32>,
    } else {
    }
    return
  }
  func.func @transform_0(%arg0: i32, %arg1: i32) -> (i32, i32) {
    %c1_i32 = arith.constant 1 : i32
    %0 = arith.muli %arg0, %c1_i32 : i32
    %1 = arith.addi %0, %arg1 : i32
    %c0_i32 = arith.constant 0 : i32
    %2 = arith.minsi %1, %c0_i32 : i32
    %c0_i32_0 = arith.constant 0 : i32
    %c0_i32_1 = arith.constant 0 : i32
    return %2, %c0_i32_0 : i32, i32
  }
  func.func @transform_1(%arg0: i32, %arg1: i32) -> (i32, i32) {
    %c1_i32 = arith.constant 1 : i32
    %0 = arith.muli %arg0, %c1_i32 : i32
    %1 = arith.addi %0, %arg1 : i32
    %c0_i32 = arith.constant 0 : i32
    %2 = arith.minsi %1, %c0_i32 : i32
    %c0_i32_0 = arith.constant 0 : i32
    %c0_i32_1 = arith.constant 0 : i32
    return %2, %c0_i32_0 : i32, i32
  }
  func.func @transform_2(%arg0: i32, %arg1: i32) -> (i32, i32, i32) {
    %c0_i32 = arith.constant 0 : i32
    %c0_i32_0 = arith.constant 0 : i32
    %c0_i32_1 = arith.constant 0 : i32
    return %arg0, %c0_i32, %c0_i32_0 : i32, i32, i32
  }
}

</mosaic_0001>

<llo_original>
// kernel: tpu_custom_call.1
$region0: #{tpu_custom_call.1}
  #allocation0 [shape = 'u32[]', space=smem, size = 0x4, offset = 0x4, fixed_abs, tag = 'smem constant byte address 0x4 - core index']
  #allocation1 [shape = 'u32[144,128]{1,0:T(1,128)}', space=vmem, size = 0x12000, scoped, tag = 'internal scratch']
  %s0 = inlined_call_operand.hbm [shape: f32[16,128], index: 0, kind: input, shape index: {}]
  %s1 = inlined_call_operand.hbm [shape: bf16[16,128], index: 1, kind: input, shape index: {}]
  %s2 = inlined_call_operand.hbm [shape: f32[1,8,128], index: 2, kind: output, shape index: {}]
  %s3 = sld [smem:[#allocation0]]
  $region38: #{tpu_custom_call.1} parent=0
    _
  %s5 = ssub.s32 1, %s3
  %s6 = scalar_select 0, %s5, %s3
  $region1: #{tpu_custom_call.1} parent=0
    #allocation2 [shape = 'u8[8192]{0}', space=vmem, size = 0x2000, scoped, tag = 'input window, operand 0, single buffered']
    #allocation3 [shape = 's32[1]{0}', space=sflag, size = 0x4, scoped, tag = 'scoped memory for tpu_custom_call.1']
    #allocation4 [shape = 's32[1]{0}', space=sflag, size = 0x4, scoped, tag = 'scoped memory for tpu_custom_call.1']
    #allocation5 [shape = 'u8[4096]{0}', space=vmem, size = 0x1000, scoped, tag = 'input window, operand 1, single buffered']
    #allocation6 [shape = 's32[1]{0}', space=sflag, size = 0x4, scoped, tag = 'scoped memory for tpu_custom_call.1']
    #allocation7 [shape = 'u8[4096]{0}', space=vmem, size = 0x1000, scoped, tag = 'output window, operand 0, single buffered']
    %7 = vsyncpa [#allocation3], 0
    %8 = vsyncpa [#allocation6], 0
    %9 = vsyncpa [#allocation4], 0
    // Predicated region
    $region2: #{tpu_custom_call.1} parent=1 // pred_check
      _
    $region3: #{tpu_custom_call.1} parent=1 // pred_check_branch
      %11 = sbr.rel (0) target = $region5
    $region4: #{tpu_custom_call.1} parent=1 // pred_region
      %s12 = sadd.s32 0, 0
      %p13 = scmp.lt.s32.totalorder %s12, 0
      %s14 = scalar_select %p13, %s12, 0
      %s15 = smul.u32 2, %s14
      %s17 = ssub.s32 256, 256
      %18 = vsyncadd [#allocation3], %s17
      %s19 = smul.addr %s15, 128
      %s20 = scalar_lea.hbm %s0, %s19
      %s21 = sshll.u32 [#allocation2], 4
      %s22 = int_to_ptr.vmem [resolvable:$true] %s21
      %27 = dma.hbm_to_vmem [thread:$0]  %s20, 256, %s22, [#allocation3], 128, 128, 8
    $region5: #{tpu_custom_call.1} parent=1 // pred_fallthru
      _
    // Predicated region
    $region6: #{tpu_custom_call.1} parent=1 // pred_check
      _
    $region7: #{tpu_custom_call.1} parent=1 // pred_check_branch
      %29 = sbr.rel (0) target = $region9
    $region8: #{tpu_custom_call.1} parent=1 // pred_region
      %s30 = sadd.s32 0, 0
      %p31 = scmp.lt.s32.totalorder %s30, 0
      %s32 = scalar_select %p31, %s30, 0
      %s33 = smul.u32 2, %s32
      %s35 = ssub.s32 128, 128
      %36 = vsyncadd [#allocation6], %s35
      %s37 = smul.addr %s33, 64
      %s38 = scalar_lea.hbm %s1, %s37
      %s39 = sshll.u32 [#allocation5], 4
      %s40 = int_to_ptr.vmem [resolvable:$true] %s39
      %45 = dma.hbm_to_vmem [thread:$0]  %s38, 128, %s40, [#allocation6], 64, 64, 4
    $region9: #{tpu_custom_call.1} parent=1 // pred_fallthru
      _
    // Predicated region
    $region10: #{tpu_custom_call.1} parent=1 // pred_check
      _
    $region11: #{tpu_custom_call.1} parent=1 // pred_check_branch
      %47 = sbr.rel (0) target = $region13
    $region12: #{tpu_custom_call.1} parent=1 // pred_region
      %48 = dma.done [#allocation3], 256
    $region13: #{tpu_custom_call.1} parent=1 // pred_fallthru
      _
    // Predicated region
    $region14: #{tpu_custom_call.1} parent=1 // pred_check
      _
    $region15: #{tpu_custom_call.1} parent=1 // pred_check_branch
      %50 = sbr.rel (0) target = $region17
    $region16: #{tpu_custom_call.1} parent=1 // pred_region
      %51 = dma.done [#allocation6], 128
    $region17: #{tpu_custom_call.1} parent=1 // pred_fallthru
      _
    %s52 = sadd.s32 0, 0
    %p53 = scmp.lt.s32.totalorder %s52, 0
    %s54 = scalar_select %p53, %s52, 0
    %s55 = smul.u32 2, %s54
    %s56 = sadd.s32 0, 0
    %p57 = scmp.lt.s32.totalorder %s56, 0
    %s58 = scalar_select %p57, %s56, 0
    %s59 = smul.u32 2, %s58
    %s60 = sadd.s32 0, 0
    %s61 = smul.u32 %s60, 16
    %p62 = scmp.eq.s32.totalorder 0, 0
    // Predicated region
    $region18: #{tpu_custom_call.1} parent=1 // pred_check
      %p63 = pneg %p62
    $region19: #{tpu_custom_call.1} parent=1 // pred_check_branch
      %65 = sbr.rel (%p63) target = $region21
    $region20: #{tpu_custom_call.1} parent=1 // pred_region
      %66 = vst [vmem:[#allocation7] sm:$0xff] 0.0
    $region21: #{tpu_custom_call.1} parent=1 // pred_fallthru
      _
    %s67 = sadd.s32 %s61, 16
    %p68 = scmp.gt.s32.totalorder %s67, 16
    %p69 = scmp.le.s32.totalorder %s67, 16
    // Predicated region
    $region22: #{tpu_custom_call.1} parent=1 // pred_check
      %p70 = pneg %p69
    $region23: #{tpu_custom_call.1} parent=1 // pred_check_branch
      %72 = sbr.rel (%p70) target = $region25
    $region24: #{tpu_custom_call.1} parent=1 // pred_region
      %v73 = vld [vmem:[#allocation7] sm:$0xff]
      %v74 = vld [vmem:[#allocation2] sm:$0xff]
      %v75 = vld [vmem:[#allocation2 + $0x8] sm:$0xff]
      %v76 = vld [vmem:[#allocation5] sm:$0xf]
      %v77 = vld [vmem:[#allocation5 + $0x4] sm:$0xf]
      %v78 = vunpack.c.l.bf16 %v76
      %v79 = vunpack.c.l.bf16 %v77
      %v80 = vand.u32 2147483647, %v74
      %v81 = vand.u32 2147483647, %v75
      %v82 = vsub.f32 0.0, %v80
      %v83 = vsub.f32 0.0, %v81
      %v84 = vmul.f32 %v82, 1.442695
      %v85 = vpow.pop %v84
      %v86 = vmul.f32 %v83, 1.442695
      %v87 = vpow.pop %v86
      %v88 = vmax.f32 %v74, 0.0
      %v89 = vmax.f32 %v75, 0.0
      %v90 = vmul.f32 %v74, %v78
      %v91 = vmul.f32 %v75, %v79
      %v92 = vsub.f32 %v88, %v90
      %v93 = vsub.f32 %v89, %v91
      %v94 = vadd.f32 %v85, 1.0
      %v95 = vlog2.pop %v94
      %v96 = vmul.f32 %v95, 0.6931472
      %v97 = vmul.f32 -0.5, %v85
      %v98 = vadd.f32 %v97, 1.0
      %v99 = vmul.f32 %v98, %v85
      %v100 = vand.u32 2147483647, %v85
      %vm101 = vcmp.lt.f32.partialorder %v100, 0.0004427343
      %v102 = vsel %vm101, %v99, %v96
      %v103 = vadd.f32 %v87, 1.0
      %v104 = vlog2.pop %v103
      %v105 = vmul.f32 %v104, 0.6931472
      %v106 = vmul.f32 -0.5, %v87
      %v107 = vadd.f32 %v106, 1.0
      %v108 = vmul.f32 %v107, %v87
      %v109 = vand.u32 2147483647, %v87
      %vm110 = vcmp.lt.f32.partialorder %v109, 0.0004427343
      %v111 = vsel %vm110, %v108, %v105
      %v112 = vadd.f32 %v92, %v102
      %v113 = vadd.f32 %v93, %v111
      %v114 = vadd.f32 %v85, 1.0
      %v115 = vadd.f32 %v87, 1.0
      %v116 = vrcp.pop %v114
      %v117 = vmul.f32 1.0, %v116
      %v118 = vrcp.pop %v115
      %v119 = vmul.f32 1.0, %v118
      %vm120 = vcmp.ge.f32.partialorder %v74, 0.0
      %vm121 = vcmp.ge.f32.partialorder %v75, 0.0
      %v122 = vsub.f32 1.0, %v117
      %v123 = vsub.f32 1.0, %v119
      %v124 = vsel %vm120, %v117, %v122
      %v125 = vsel %vm121, %v119, %v123
      %vm126 = vcmp.gt.f32.partialorder %v78, 0.5
      %vm127 = vcmp.gt.f32.partialorder %v79, 0.5
      %v128 = vsub.f32 1.0, %v124
      %v129 = vsub.f32 1.0, %v125
      %v130 = vsel %vm126, %v124, %v128
      %v131 = vsel %vm127, %v125, %v129
      %v132 = vsub.f32 1.0, %v130
      %v133 = vsub.f32 1.0, %v131
      %v134 = vmul.f32 %v132, %v132
      %v135 = vmul.f32 %v133, %v133
      %v136 = vmul.f32 %v134, %v112
      %v137 = vmul.f32 %v135, %v113
      %v138 = vadd.f32 %v136, %v137
      %v139 = vadd.f32 %v138, 0.0
      %v140 = vadd.f32 %v73, %v139
      %141 = vst [vmem:[#allocation7] sm:$0xff] %v140
    $region25: #{tpu_custom_call.1} parent=1 // pred_fallthru
      _
    // Predicated region
    $region26: #{tpu_custom_call.1} parent=1 // pred_check
      %p142 = pneg %p68
    $region27: #{tpu_custom_call.1} parent=1 // pred_check_branch
      %144 = sbr.rel (%p142) target = $region29
    $region28: #{tpu_custom_call.1} parent=1 // pred_region
      %v145 = vlaneseq
      %v146 = vshrl.u32 %v145, 7
      %v147 = vadd.s32 %v146, 8
      %v148 = vld [vmem:[#allocation7] sm:$0xff]
      %v149 = vld [vmem:[#allocation2] sm:$0xff]
      %v150 = vld [vmem:[#allocation2 + $0x8] sm:$0xff]
      %v151 = vld [vmem:[#allocation5] sm:$0xf]
      %v152 = vld [vmem:[#allocation5 + $0x4] sm:$0xf]
      %v153 = vunpack.c.l.bf16 %v151
      %v154 = vunpack.c.l.bf16 %v152
      %v155 = vand.u32 2147483647, %v149
      %v156 = vand.u32 2147483647, %v150
      %v157 = vsub.f32 0.0, %v155
      %v158 = vsub.f32 0.0, %v156
      %v159 = vmul.f32 %v157, 1.442695
      %v160 = vpow.pop %v159
      %v161 = vmul.f32 %v158, 1.442695
      %v162 = vpow.pop %v161
      %v163 = vmax.f32 %v149, 0.0
      %v164 = vmax.f32 %v150, 0.0
      %v165 = vmul.f32 %v149, %v153
      %v166 = vmul.f32 %v150, %v154
      %v167 = vsub.f32 %v163, %v165
      %v168 = vsub.f32 %v164, %v166
      %v169 = vadd.f32 %v160, 1.0
      %v170 = vlog2.pop %v169
      %v171 = vmul.f32 %v170, 0.6931472
      %v172 = vmul.f32 -0.5, %v160
      %v173 = vadd.f32 %v172, 1.0
      %v174 = vmul.f32 %v173, %v160
      %v175 = vand.u32 2147483647, %v160
      %vm176 = vcmp.lt.f32.partialorder %v175, 0.0004427343
      %v177 = vsel %vm176, %v174, %v171
      %v178 = vadd.f32 %v162, 1.0
      %v179 = vlog2.pop %v178
      %v180 = vmul.f32 %v179, 0.6931472
      %v181 = vmul.f32 -0.5, %v162
      %v182 = vadd.f32 %v181, 1.0
      %v183 = vmul.f32 %v182, %v162
      %v184 = vand.u32 2147483647, %v162
      %vm185 = vcmp.lt.f32.partialorder %v184, 0.0004427343
      %v186 = vsel %vm185, %v183, %v180
      %v187 = vadd.f32 %v167, %v177
      %v188 = vadd.f32 %v168, %v186
      %v189 = vadd.f32 %v160, 1.0
      %v190 = vadd.f32 %v162, 1.0
      %v191 = vrcp.pop %v189
      %v192 = vmul.f32 1.0, %v191
      %v193 = vrcp.pop %v190
      %v194 = vmul.f32 1.0, %v193
      %vm195 = vcmp.ge.f32.partialorder %v149, 0.0
      %vm196 = vcmp.ge.f32.partialorder %v150, 0.0
      %v197 = vsub.f32 1.0, %v192
      %v198 = vsub.f32 1.0, %v194
      %v199 = vsel %vm195, %v192, %v197
      %v200 = vsel %vm196, %v194, %v198
      %vm201 = vcmp.gt.f32.partialorder %v153, 0.5
      %vm202 = vcmp.gt.f32.partialorder %v154, 0.5
      %v203 = vsub.f32 1.0, %v199
      %v204 = vsub.f32 1.0, %v200
      %v205 = vsel %vm201, %v199, %v203
      %v206 = vsel %vm202, %v200, %v204
      %v207 = vsub.f32 1.0, %v205
      %v208 = vsub.f32 1.0, %v206
      %v209 = vmul.f32 %v207, %v207
      %v210 = vmul.f32 %v208, %v208
      %v211 = vmul.f32 %v209, %v187
      %v212 = vmul.f32 %v210, %v188
      %s213 = sadd.s32 %s61, 0
      %v214 = vstv %s213
      %v215 = vadd.s32 %v214, %v146
      %v216 = vadd.s32 %v214, %v147
      %vm217 = vcmp.lt.s32.totalorder %v215, 16
      %vm218 = vcmp.lt.s32.totalorder %v216, 16
      %v219 = vsel %vm217, %v211, 0.0
      %v220 = vsel %vm218, %v212, 0.0
      %v221 = vadd.f32 %v219, %v220
      %v222 = vadd.f32 %v221, 0.0
      %v223 = vadd.f32 %v148, %v222
      %224 = vst [vmem:[#allocation7] sm:$0xff] %v223
    $region29: #{tpu_custom_call.1} parent=1 // pred_fallthru
      _
    // Predicated region
    $region30: #{tpu_custom_call.1} parent=1 // pred_check
      _
    $region31: #{tpu_custom_call.1} parent=1 // pred_check_branch
      %226 = sbr.rel (0) target = $region33
    $region32: #{tpu_custom_call.1} parent=1 // pred_region
      %s228 = ssub.s32 128, 128
      %229 = vsyncadd [#allocation4], %s228
      %s231 = sshll.u32 [#allocation7], 4
      %s232 = int_to_ptr.vmem [resolvable:$true] %s231
      %234 = dma.vmem_to_hbm [thread:$0]  %s232, 128, %s2, [#allocation4]
    $region33: #{tpu_custom_call.1} parent=1 // pred_fallthru
      _
    // Predicated region
    $region34: #{tpu_custom_call.1} parent=1 // pred_check
      _
    $region35: #{tpu_custom_call.1} parent=1 // pred_check_branch
      %236 = sbr.rel (0) target = $region37
    $region36: #{tpu_custom_call.1} parent=1 // pred_region
      %237 = dma.done [#allocation4], 128
    $region37: #{tpu_custom_call.1} parent=1 // pred_fallthru
      _
    %238 = vsyncpa [#allocation3], 1
    %239 = vsyncpa [#allocation6], 1
    %240 = vsyncpa [#allocation4], 1

</llo_original>
